<compile_context>
chip_gen: v6e
topology: v6e:2x2x1
jax: 0.10.0
libtpu: 0.0.40
codegen_flags: <defaults>
</compile_context>

<pallas_src>
import functools

import jax
import jax.numpy as jnp
from jax.experimental import pallas as pl
from jax.experimental.pallas import tpu as pltpu


def _cdiv(a, b):
    return -(-a // b)


def _round_up(x, m):
    return _cdiv(x, m) * m


def _mu_tile(x_ref, w1_ref, b1_ref, w2_ref, b2_ref, w3_ref, b3_ref,
             act_limit, matmul_dtype):
    """act_limit * tanh(MLP(x)) for one (TB, S) state tile (f32 epilogue)."""
    x = x_ref[...].astype(matmul_dtype)          # f32 -> bf16 in-kernel (VPU)
    h = jnp.dot(x, w1_ref[...], preferred_element_type=jnp.float32)
    h = jnp.maximum(h + b1_ref[...], 0.0)
    h = jnp.dot(h.astype(matmul_dtype), w2_ref[...],
                preferred_element_type=jnp.float32)
    h = jnp.maximum(h + b2_ref[...], 0.0)
    o = jnp.dot(h.astype(matmul_dtype), w3_ref[...],
                preferred_element_type=jnp.float32)
    return act_limit * jnp.tanh(o + b3_ref[...])


def _actor_kernel_det(x_ref, w1_ref, b1_ref, w2_ref, b2_ref, w3_ref, b3_ref,
                      out_ref, *, act_limit, matmul_dtype):
    mu = _mu_tile(x_ref, w1_ref, b1_ref, w2_ref, b2_ref, w3_ref, b3_ref,
                  act_limit, matmul_dtype)
    out_ref[...] = mu.astype(out_ref.dtype)


def _actor_kernel_stoch(x_ref, noise_ref, w1_ref, b1_ref, w2_ref, b2_ref,
                        w3_ref, b3_ref, out_ref, *, act_limit, act_noise,
                        clip, noise_clip, matmul_dtype):
    mu = _mu_tile(x_ref, w1_ref, b1_ref, w2_ref, b2_ref, w3_ref, b3_ref,
                  act_limit, matmul_dtype)
    noise = noise_ref[...].astype(jnp.float32) * act_noise
    if clip:
        noise = jnp.clip(noise, -noise_clip, noise_clip)
    out_ref[...] = jnp.clip(mu + noise, -act_limit,
                            act_limit).astype(out_ref.dtype)


def prepare_actor_params(params, matmul_dtype=jnp.bfloat16):
    """One-time (init) cast of weights to the MXU dtype. Biases stay f32.

    No feature-dim padding: BlockSpecs use full array dims, so DMAs only move
    real bytes (the old 128-lane padding wasted ~5x on the state input and
    ~21x on the action output).
    """
    prepared = {
        "w1": params["w1"].astype(matmul_dtype),
        "b1": params["b1"].astype(jnp.float32).reshape(1, -1),
        "w2": params["w2"].astype(matmul_dtype),
        "b2": params["b2"].astype(jnp.float32).reshape(1, -1),
        "w3": params["w3"].astype(matmul_dtype),
        "b3": params["b3"].astype(jnp.float32).reshape(1, -1),
    }
    S, H = params["w1"].shape
    A = params["w3"].shape[1]
    meta = dict(state_dim=S, hidden_dim=H, action_dim=A,
                matmul_dtype=matmul_dtype)
    return prepared, meta


def _choose_batch_tile(batch, block_b):
    """Balanced batch tiling.

    Small batches -> a single full-dim tile (no padded rows at all).
    B > 256     -> >= 2 grid steps (multiples of 256) so v7x's two
    TensorCores both get work and padding waste stays balanced.
    """
    if batch <= 256:
        return batch, 1
    n_tiles = max(2, _cdiv(batch, block_b))
    tb = _round_up(_cdiv(batch, n_tiles), 256)
    return tb, _cdiv(batch, tb)


def mlp_actor_forward(state, prepared, meta, *, rng=None, act_limit=1.0,
                      act_noise=0.1, deterministic=False, clip=False,
                      noise_clip=0.5, block_b=1024):
    """MLPActor forward as a single batch-gridded Pallas kernel.

    state : (B, state_dim) float32
    rng   : jax PRNG key for the stochastic branch (required unless
            deterministic=True).
    """
    B, S = state.shape
    assert S == meta["state_dim"]
    H, A = meta["hidden_dim"], meta["action_dim"]
    matmul_dtype = meta["matmul_dtype"]

    TB, num_tiles = _choose_batch_tile(B, block_b)

    # Weights/biases: constant index map -> loaded once, VMEM-resident.
    weight_keys = ("w1", "b1", "w2", "b2", "w3", "b3")
    weight_args = [prepared[k] for k in weight_keys]
    weight_specs = [pl.BlockSpec(a.shape, lambda i: (0, 0)) for a in weight_args]

    x_spec = pl.BlockSpec((TB, S), lambda i: (i, 0))      # f32 state, real cols
    out_spec = pl.BlockSpec((TB, A), lambda i: (i, 0))    # real action lanes only

    weight_bytes = sum(int(v.size) * v.dtype.itemsize for v in weight_args)
    flops = 2 * B * (S * H + H * H + H * A)
    transcendentals = B * A                                # tanh epilogue
    bytes_accessed = B * S * 4 + B * A * 4 + weight_bytes

    if deterministic:
        kernel = functools.partial(_actor_kernel_det,
                                   act_limit=float(act_limit),
                                   matmul_dtype=matmul_dtype)
        in_specs = [x_spec] + weight_specs
        args = (state,) + tuple(weight_args)
    else:
        if rng is None:
            raise ValueError("rng key required when deterministic=False")
        # Standard-normal noise drawn host-side (pltpu in-kernel PRNG has no
        # CPU/interpret lowering); scale / clip / add / clamp fused in-kernel.
        noise = jax.random.normal(rng, (B, A), jnp.float32)
        kernel = functools.partial(_actor_kernel_stoch,
                                   act_limit=float(act_limit),
                                   act_noise=float(act_noise),
                                   clip=bool(clip),
                                   noise_clip=float(noise_clip),
                                   matmul_dtype=matmul_dtype)
        in_specs = [x_spec, pl.BlockSpec((TB, A), lambda i: (i, 0))] + weight_specs
        args = (state, noise) + tuple(weight_args)
        bytes_accessed += B * A * 4

    return pl.pallas_call(
        kernel,
        out_shape=jax.ShapeDtypeStruct((B, A), jnp.float32),
        grid=(num_tiles,),
        in_specs=in_specs,
        out_specs=out_spec,
        cost_estimate=pl.CostEstimate(flops=flops,
                                      transcendentals=transcendentals,
                                      bytes_accessed=bytes_accessed),
        compiler_params=pltpu.CompilerParams(
            dimension_semantics=("parallel",),   # v7x: shard batch over 2 TCs
        ),
    )(*args)


def init_params(key, state_dim, hidden_dim, action_dim):
    """Deterministic synthetic parameter init (normal, fan-in scaled)."""
    ks = jax.random.split(key, 3)
    scale = lambda fan_in: 1.0 / jnp.sqrt(jnp.float32(fan_in))
    return {
        "w1": jax.random.normal(ks[0], (state_dim, hidden_dim), jnp.float32)
              * scale(state_dim),
        "b1": jnp.zeros((1, hidden_dim), jnp.float32),
        "w2": jax.random.normal(ks[1], (hidden_dim, hidden_dim), jnp.float32)
              * scale(hidden_dim),
        "b2": jnp.zeros((1, hidden_dim), jnp.float32),
        "w3": jax.random.normal(ks[2], (hidden_dim, action_dim), jnp.float32)
              * scale(hidden_dim),
        "b3": jnp.zeros((1, action_dim), jnp.float32),
    }


if __name__ == "__main__":
    # Small shapes consistent with the module (state_dim, hidden_dim, action_dim).
    B, STATE_DIM, HIDDEN_DIM, ACTION_DIM = 16, 24, 128, 6
    ACT_LIMIT, ACT_NOISE, NOISE_CLIP = 1.0, 0.1, 0.5

    key = jax.random.PRNGKey(0)
    k_state, k_params, k_noise = jax.random.split(key, 3)

    state = jax.random.normal(k_state, (B, STATE_DIM), jnp.float32)
    params = init_params(k_params, STATE_DIM, HIDDEN_DIM, ACTION_DIM)
    prepared, meta = prepare_actor_params(params, matmul_dtype=jnp.bfloat16)

    # Deterministic branch: pi_action == mu.
    mu = mlp_actor_forward(state, prepared, meta, act_limit=ACT_LIMIT,
                           act_noise=ACT_NOISE, deterministic=True)
    mu = jax.block_until_ready(mu)

    # Stochastic branch (fused noise scale + add + clamp in-kernel).
    pi = mlp_actor_forward(state, prepared, meta, rng=k_noise,
                           act_limit=ACT_LIMIT, act_noise=ACT_NOISE,
                           deterministic=False, clip=False)
    pi = jax.block_until_ready(pi)

    # Stochastic branch with clipped noise.
    pi_clip = mlp_actor_forward(state, prepared, meta, rng=k_noise,
                                act_limit=ACT_LIMIT, act_noise=ACT_NOISE,
                                deterministic=False, clip=True,
                                noise_clip=NOISE_CLIP)
    pi_clip = jax.block_until_ready(pi_clip)

    # Pure-JAX reference with the same bf16 operands / f32 accumulation.
    def ref_mu(x, p, dtype):
        w1, w2, w3 = (p["w1"].astype(dtype), p["w2"].astype(dtype),
                      p["w3"].astype(dtype))
        h1 = jnp.maximum(jnp.dot(x.astype(dtype), w1,
                                 preferred_element_type=jnp.float32) + p["b1"], 0.0)
        h2 = jnp.maximum(jnp.dot(h1.astype(dtype), w2,
                                 preferred_element_type=jnp.float32) + p["b2"], 0.0)
        o = jnp.dot(h2.astype(dtype), w3,
                    preferred_element_type=jnp.float32) + p["b3"]
        return ACT_LIMIT * jnp.tanh(o)

    mu_ref = ref_mu(state, params, jnp.bfloat16)

    assert mu.shape == (B, ACTION_DIM)
    assert bool(jnp.allclose(mu, mu_ref, atol=2e-3, rtol=2e-3)), \
        float(jnp.max(jnp.abs(mu - mu_ref)))

    # Stochastic references: same noise realization, pure-JAX epilogue.
    noise_ref = jax.random.normal(k_noise, (B, ACTION_DIM), jnp.float32)
    pi_ref = jnp.clip(mu_ref + noise_ref * ACT_NOISE, -ACT_LIMIT, ACT_LIMIT)
    pi_clip_ref = jnp.clip(
        mu_ref + jnp.clip(noise_ref * ACT_NOISE, -NOISE_CLIP, NOISE_CLIP),
        -ACT_LIMIT, ACT_LIMIT)

    assert bool(jnp.allclose(pi, pi_ref, atol=2e-3, rtol=2e-3)), \
        float(jnp.max(jnp.abs(pi - pi_ref)))
    assert bool(jnp.allclose(pi_clip, pi_clip_ref, atol=2e-3, rtol=2e-3)), \
        float(jnp.max(jnp.abs(pi_clip - pi_clip_ref)))
    assert bool(jnp.all(jnp.abs(pi) <= ACT_LIMIT + 1e-6))
    assert bool(jnp.all(jnp.abs(pi_clip) <= ACT_LIMIT + 1e-6))
    assert float(jnp.std(pi - mu)) > 1e-3    # actually perturbed

    print("KERNEL_OK")
</pallas_src>

<mosaic_0001>
module attributes {stable_mosaic.version = 11 : i64} {
  func.func @_actor_kernel_det(%arg0: i32, %arg1: memref<16x24xf32, #tpu.memory_space<vmem>>, %arg2: memref<24x128xbf16, #tpu.memory_space<vmem>>, %arg3: memref<1x128xf32, #tpu.memory_space<vmem>>, %arg4: memref<128x128xbf16, #tpu.memory_space<vmem>>, %arg5: memref<1x128xf32, #tpu.memory_space<vmem>>, %arg6: memref<128x6xbf16, #tpu.memory_space<vmem>>, %arg7: memref<1x6xf32, #tpu.memory_space<vmem>>, %arg8: memref<16x6xf32, #tpu.memory_space<vmem>>) attributes {dimension_semantics = [#tpu.dimension_semantics<parallel>], iteration_bounds = array<i64: 1>, scalar_prefetch = 0 : i64, scratch_operands = 0 : i64, tpu.core_type = #tpu.core_type<tc>, window_params = [{transform_indices = @transform_0, window_bounds = array<i64: 16, 24>}, {pipeline_mode = #tpu.pipeline_mode<synchronous>, transform_indices = @transform_1, window_bounds = array<i64: 24, 128>}, {pipeline_mode = #tpu.pipeline_mode<synchronous>, transform_indices = @transform_2, window_bounds = array<i64: 1, 128>}, {pipeline_mode = #tpu.pipeline_mode<synchronous>, transform_indices = @transform_3, window_bounds = array<i64: 128, 128>}, {pipeline_mode = #tpu.pipeline_mode<synchronous>, transform_indices = @transform_4, window_bounds = array<i64: 1, 128>}, {pipeline_mode = #tpu.pipeline_mode<synchronous>, transform_indices = @transform_5, window_bounds = array<i64: 128, 6>}, {pipeline_mode = #tpu.pipeline_mode<synchronous>, transform_indices = @transform_6, window_bounds = array<i64: 1, 6>}, {transform_indices = @transform_7, window_bounds = array<i64: 16, 6>}]} {
    %c0 = arith.constant 0 : index
    %c0_0 = arith.constant 0 : index
    %0 = vector.load %arg1[%c0, %c0_0] : memref<16x24xf32, #tpu.memory_space<vmem>>, vector<16x24xf32>
    %1 = arith.truncf %0 : vector<16x24xf32> to vector<16x24xbf16>
    %c0_1 = arith.constant 0 : index
    %c0_2 = arith.constant 0 : index
    %2 = vector.load %arg2[%c0_1, %c0_2] : memref<24x128xbf16, #tpu.memory_space<vmem>>, vector<24x128xbf16>
    %cst = arith.constant dense<0.000000e+00> : vector<16x128xf32>
    %3 = tpu.matmul %1, %2, %cst {dimension_numbers = #tpu.dot_dimension_numbers<[1], [0], [0], [1], [0, 0, 1, 1], [], []>} : vector<16x24xbf16>, vector<24x128xbf16>, vector<16x128xf32> -> vector<16x128xf32>
    %c0_3 = arith.constant 0 : index
    %c0_4 = arith.constant 0 : index
    %4 = vector.load %arg3[%c0_3, %c0_4] : memref<1x128xf32, #tpu.memory_space<vmem>>, vector<1x128xf32>
    %5 = vector.broadcast %4 : vector<1x128xf32> to vector<16x128xf32>
    %6 = arith.addf %3, %5 : vector<16x128xf32>
    %cst_5 = arith.constant 0.000000e+00 : f32
    %7 = vector.broadcast %cst_5 : f32 to vector<16x128xf32>
    %8 = arith.maximumf %6, %7 : vector<16x128xf32>
    %9 = arith.truncf %8 : vector<16x128xf32> to vector<16x128xbf16>
    %c0_6 = arith.constant 0 : index
    %c0_7 = arith.constant 0 : index
    %10 = vector.load %arg4[%c0_6, %c0_7] : memref<128x128xbf16, #tpu.memory_space<vmem>>, vector<128x128xbf16>
    %cst_8 = arith.constant dense<0.000000e+00> : vector<16x128xf32>
    %11 = tpu.matmul %9, %10, %cst_8 {dimension_numbers = #tpu.dot_dimension_numbers<[1], [0], [0], [1], [0, 0, 1, 1], [], []>} : vector<16x128xbf16>, vector<128x128xbf16>, vector<16x128xf32> -> vector<16x128xf32>
    %c0_9 = arith.constant 0 : index
    %c0_10 = arith.constant 0 : index
    %12 = vector.load %arg5[%c0_9, %c0_10] : memref<1x128xf32, #tpu.memory_space<vmem>>, vector<1x128xf32>
    %13 = vector.broadcast %12 : vector<1x128xf32> to vector<16x128xf32>
    %14 = arith.addf %11, %13 : vector<16x128xf32>
    %cst_11 = arith.constant 0.000000e+00 : f32
    %15 = vector.broadcast %cst_11 : f32 to vector<16x128xf32>
    %16 = arith.maximumf %14, %15 : vector<16x128xf32>
    %17 = arith.truncf %16 : vector<16x128xf32> to vector<16x128xbf16>
    %c0_12 = arith.constant 0 : index
    %c0_13 = arith.constant 0 : index
    %18 = vector.load %arg6[%c0_12, %c0_13] : memref<128x6xbf16, #tpu.memory_space<vmem>>, vector<128x6xbf16>
    %cst_14 = arith.constant dense<0.000000e+00> : vector<16x6xf32>
    %19 = tpu.matmul %17, %18, %cst_14 {dimension_numbers = #tpu.dot_dimension_numbers<[1], [0], [0], [1], [0, 0, 1, 1], [], []>} : vector<16x128xbf16>, vector<128x6xbf16>, vector<16x6xf32> -> vector<16x6xf32>
    %c0_15 = arith.constant 0 : index
    %c0_16 = arith.constant 0 : index
    %20 = vector.load %arg7[%c0_15, %c0_16] : memref<1x6xf32, #tpu.memory_space<vmem>>, vector<1x6xf32>
    %21 = vector.broadcast %20 : vector<1x6xf32> to vector<16x6xf32>
    %22 = arith.addf %19, %21 : vector<16x6xf32>
    %23 = math.tanh %22 : vector<16x6xf32>
    %cst_17 = arith.constant 1.000000e+00 : f32
    %24 = vector.broadcast %cst_17 : f32 to vector<16x6xf32>
    %25 = arith.mulf %24, %23 : vector<16x6xf32>
    %c0_18 = arith.constant 0 : index
    %c0_19 = arith.constant 0 : index
    %26 = vector.load %arg8[%c0_18, %c0_19] : memref<16x6xf32, #tpu.memory_space<vmem>>, vector<16x6xf32>
    tpu.vector_store %arg8[%c0_18, %c0_19], %25 {strides = array<i32>} : memref<16x6xf32, #tpu.memory_space<vmem>>, vector<16x6xf32>,
    return
  }
  func.func @transform_0(%arg0: i32) -> (i32, i32) {
    %c0_i32 = arith.constant 0 : i32
    %c0_i32_0 = arith.constant 0 : i32
    return %arg0, %c0_i32 : i32, i32
  }
  func.func @transform_1(%arg0: i32) -> (i32, i32) {
    %c0_i32 = arith.constant 0 : i32
    %c0_i32_0 = arith.constant 0 : i32
    %c0_i32_1 = arith.constant 0 : i32
    return %c0_i32, %c0_i32_0 : i32, i32
  }
  func.func @transform_2(%arg0: i32) -> (i32, i32) {
    %c0_i32 = arith.constant 0 : i32
    %c0_i32_0 = arith.constant 0 : i32
    %c0_i32_1 = arith.constant 0 : i32
    return %c0_i32, %c0_i32_0 : i32, i32
  }
  func.func @transform_3(%arg0: i32) -> (i32, i32) {
    %c0_i32 = arith.constant 0 : i32
    %c0_i32_0 = arith.constant 0 : i32
    %c0_i32_1 = arith.constant 0 : i32
    return %c0_i32, %c0_i32_0 : i32, i32
  }
  func.func @transform_4(%arg0: i32) -> (i32, i32) {
    %c0_i32 = arith.constant 0 : i32
    %c0_i32_0 = arith.constant 0 : i32
    %c0_i32_1 = arith.constant 0 : i32
    return %c0_i32, %c0_i32_0 : i32, i32
  }
  func.func @transform_5(%arg0: i32) -> (i32, i32) {
    %c0_i32 = arith.constant 0 : i32
    %c0_i32_0 = arith.constant 0 : i32
    %c0_i32_1 = arith.constant 0 : i32
    return %c0_i32, %c0_i32_0 : i32, i32
  }
  func.func @transform_6(%arg0: i32) -> (i32, i32) {
    %c0_i32 = arith.constant 0 : i32
    %c0_i32_0 = arith.constant 0 : i32
    %c0_i32_1 = arith.constant 0 : i32
    return %c0_i32, %c0_i32_0 : i32, i32
  }
  func.func @transform_7(%arg0: i32) -> (i32, i32) {
    %c0_i32 = arith.constant 0 : i32
    %c0_i32_0 = arith.constant 0 : i32
    return %arg0, %c0_i32 : i32, i32
  }
}

</mosaic_0001>

<llo_original>
// kernel: tpu_custom_call.1
$region0: #{tpu_custom_call.1}
  #allocation0 [shape = 'u32[]', space=smem, size = 0x4, offset = 0x4, fixed_abs, tag = 'smem constant byte address 0x4 - core index']
  #allocation1 [shape = 'u32[144,128]{1,0:T(1,128)}', space=vmem, size = 0x12000, scoped, tag = 'internal scratch']
  %s0 = inlined_call_operand.hbm [shape: f32[16,24], index: 0, kind: input, shape index: {}]
  %s1 = inlined_call_operand.hbm [shape: bf16[24,128], index: 1, kind: input, shape index: {}]
  %s2 = inlined_call_operand.vmem [shape: f32[1,128], index: 2, kind: input, shape index: {}]
  %s3 = inlined_call_operand.vmem [shape: bf16[128,128], index: 3, kind: input, shape index: {}]
  %s4 = inlined_call_operand.vmem [shape: f32[1,128], index: 4, kind: input, shape index: {}]
  %s5 = inlined_call_operand.vmem [shape: bf16[128,6], index: 5, kind: input, shape index: {}]
  %s6 = inlined_call_operand.vmem [shape: f32[1,6], index: 6, kind: input, shape index: {}]
  %s7 = inlined_call_operand.vmem [shape: f32[16,6], index: 7, kind: output, shape index: {}]
  %s8 = sld [smem:[#allocation0]]
  $region46: #{tpu_custom_call.1} parent=0
    _
  %s10 = ssub.s32 1, %s8
  %s11 = scalar_select 0, %s10, %s8
  $region1: #{tpu_custom_call.1} parent=0
    #allocation2 [shape = 'u8[8192]{0}', space=vmem, size = 0x2000, scoped, tag = 'input window, operand 0, single buffered']
    #allocation3 [shape = 's32[1]{0}', space=sflag, size = 0x4, scoped, tag = 'scoped memory for tpu_custom_call.1']
    #allocation4 [shape = 'u8[6144]{0}', space=vmem, size = 0x1800, scoped, tag = 'input window, operand 1, single buffered']
    #allocation5 [shape = 's32[1]{0}', space=sflag, size = 0x4, scoped, tag = 'scoped memory for tpu_custom_call.1']
    %12 = vsyncpa [#allocation3], 0
    %13 = vsyncpa [#allocation5], 0
    // Predicated region
    $region2: #{tpu_custom_call.1} parent=1 // pred_check
      _
    $region3: #{tpu_custom_call.1} parent=1 // pred_check_branch
      %15 = sbr.rel (0) target = $region5
    $region4: #{tpu_custom_call.1} parent=1 // pred_region
      %s17 = ssub.s32 256, 256
      %18 = vsyncadd [#allocation3], %s17
      %s19 = sshll.u32 [#allocation2], 4
      %s20 = int_to_ptr.vmem [resolvable:$true] %s19
      %25 = dma.hbm_to_vmem [thread:$0]  %s0, 256, %s20, [#allocation3], 128, 128, 8
    $region5: #{tpu_custom_call.1} parent=1 // pred_fallthru
      _
    // Predicated region
    $region6: #{tpu_custom_call.1} parent=1 // pred_check
      _
    $region7: #{tpu_custom_call.1} parent=1 // pred_check_branch
      %27 = sbr.rel (0) target = $region9
    $region8: #{tpu_custom_call.1} parent=1 // pred_region
      %s29 = ssub.s32 192, 192
      %30 = vsyncadd [#allocation5], %s29
      %s31 = sshll.u32 [#allocation4], 4
      %s32 = int_to_ptr.vmem [resolvable:$true] %s31
      %37 = dma.hbm_to_vmem [thread:$0]  %s1, 192, %s32, [#allocation5], 64, 64, 4
    $region9: #{tpu_custom_call.1} parent=1 // pred_fallthru
      _
    // Predicated region
    $region10: #{tpu_custom_call.1} parent=1 // pred_check
      _
    $region11: #{tpu_custom_call.1} parent=1 // pred_check_branch
      %39 = sbr.rel (0) target = $region13
    $region12: #{tpu_custom_call.1} parent=1 // pred_region
      _
    $region13: #{tpu_custom_call.1} parent=1 // pred_fallthru
      _
    // Predicated region
    $region14: #{tpu_custom_call.1} parent=1 // pred_check
      _
    $region15: #{tpu_custom_call.1} parent=1 // pred_check_branch
      %41 = sbr.rel (0) target = $region17
    $region16: #{tpu_custom_call.1} parent=1 // pred_region
      _
    $region17: #{tpu_custom_call.1} parent=1 // pred_fallthru
      _
    // Predicated region
    $region18: #{tpu_custom_call.1} parent=1 // pred_check
      _
    $region19: #{tpu_custom_call.1} parent=1 // pred_check_branch
      %43 = sbr.rel (0) target = $region21
    $region20: #{tpu_custom_call.1} parent=1 // pred_region
      _
    $region21: #{tpu_custom_call.1} parent=1 // pred_fallthru
      _
    // Predicated region
    $region22: #{tpu_custom_call.1} parent=1 // pred_check
      _
    $region23: #{tpu_custom_call.1} parent=1 // pred_check_branch
      %45 = sbr.rel (0) target = $region25
    $region24: #{tpu_custom_call.1} parent=1 // pred_region
      _
    $region25: #{tpu_custom_call.1} parent=1 // pred_fallthru
      _
    // Predicated region
    $region26: #{tpu_custom_call.1} parent=1 // pred_check
      _
    $region27: #{tpu_custom_call.1} parent=1 // pred_check_branch
      %47 = sbr.rel (0) target = $region29
    $region28: #{tpu_custom_call.1} parent=1 // pred_region
      _
    $region29: #{tpu_custom_call.1} parent=1 // pred_fallthru
      _
    // Predicated region
    $region30: #{tpu_custom_call.1} parent=1 // pred_check
      _
    $region31: #{tpu_custom_call.1} parent=1 // pred_check_branch
      %49 = sbr.rel (0) target = $region33
    $region32: #{tpu_custom_call.1} parent=1 // pred_region
      %50 = dma.done [#allocation3], 256
    $region33: #{tpu_custom_call.1} parent=1 // pred_fallthru
      _
    // Predicated region
    $region34: #{tpu_custom_call.1} parent=1 // pred_check
      _
    $region35: #{tpu_custom_call.1} parent=1 // pred_check_branch
      %52 = sbr.rel (0) target = $region37
    $region36: #{tpu_custom_call.1} parent=1 // pred_region
      %53 = dma.done [#allocation5], 192
    $region37: #{tpu_custom_call.1} parent=1 // pred_fallthru
      _
    %v55 = vld [vmem:[#allocation2] sm:$0xff]
    %v56 = vld [vmem:[#allocation2 + $0x8] sm:$0xff]
    %v57 = vpack.c.bf16 %v56, %v55
    %v58 = vld [vmem:[#allocation4] sm:$0xf]
    %v59 = vld [vmem:[#allocation4 + $0x4] sm:$0xf]
    %v60 = vld [vmem:[#allocation4 + $0x8] sm:$0xf]
    %v61 = vld [vmem:[%s2] sm:$0x1]
    %v63 = vlaneseq
    %v64 = vshrl.u32 %v63, 7
    %v65 = vsub.s32 0, %v64
    %v66 = vrot.slane %v61, %v65
    %v71 = vunpack.c.l.b16 %v58
    %v72 = vunpack.c.l.b16 %v59
    %v73 = vunpack.c.l.b16 %v60
    %v74 = vpack.c.b16 %v72, %v71
    %v75 = vpack.c.b16 %v73, %v73
    %vm77 = vcmask 195584
    %v79 = vsel %vm77, %v57, 0
    %vm81 = vcmask 1043456
    %v83 = vsel %vm81, %v75, 0
    %85 = vmatprep.subr.bf16.mxu0 0
    %86 = vmatpush1.bf16.msra.mxu0 0
    %87 = vmatprep.subr.bf16.mxu0 0
    %88 = vmatpush1.bf16.msra.mxu0 0
    %89 = vmatprep.subr.bf16.mxu0 0
    %90 = vmatpush1.bf16.msra.mxu0 0
    %91 = vmatprep.subr.bf16.mxu0 0
    %92 = vmatpush1.bf16.msra.mxu0 0
    %93 = vmatprep.subr.bf16.mxu0 0
    %94 = vmatpush1.bf16.msra.mxu0 0
    %95 = vmatprep.subr.bf16.mxu0 0
    %96 = vmatpush1.bf16.msra.mxu0 0
    %97 = vmatprep.subr.bf16.mxu0 0
    %98 = vmatpush1.bf16.msra.mxu0 %v83
    %99 = vmatprep.subr.bf16.mxu0 0
    %100 = vmatpush1.bf16.msra.mxu0 %v74
    %101 = vmatprep.subr.bf16.mxu0 0
    %102 = vmatpush2.bf16.msra.mxu0 0
    %103 = vmatprep.subr.bf16.mxu0 0
    %104 = vmatpush2.bf16.msra.mxu0 0
    %105 = vmatprep.subr.bf16.mxu0 0
    %106 = vmatpush2.bf16.msra.mxu0 0
    %107 = vmatprep.subr.bf16.mxu0 0
    %108 = vmatpush2.bf16.msra.mxu0 0
    %109 = vmatprep.subr.bf16.mxu0 0
    %110 = vmatpush2.bf16.msra.mxu0 0
    %111 = vmatprep.subr.bf16.mxu0 0
    %112 = vmatpush2.bf16.msra.mxu0 0
    %113 = vmatprep.subr.bf16.mxu0 0
    %114 = vmatpush2.bf16.msra.mxu0 0
    %115 = vmatprep.subr.bf16.mxu0 0
    %116 = vmatpush2.bf16.msra.mxu0 0
    %117 = vmatprep.mubr.bf16.mxu0 0
    %118 = vmatmul.mubr.bf16.gmra.mxu0 %v79
    %v119 = vpop.f32.mrf.mxu0
    %v120 = vadd.f32 %v66, %v119
    %v121 = vpop.f32.mrf.mxu0
    %v122 = vpop.f32.mrf.mxu0
    %v123 = vadd.f32 %v66, %v122
    %v124 = vpop.f32.mrf.mxu0
    %125 = vdwg.mxu0
    %v126 = vmax.f32 %v120, 0.0
    %v127 = vmax.f32 %v123, 0.0
    %v128 = vpack.c.bf16 %v127, %v126
    %v129 = vld [vmem:[%s3] sm:$0xf]
    %v130 = vld [vmem:[%s3 + $0x4] sm:$0xf]
    %v131 = vld [vmem:[%s3 + $0x8] sm:$0xf]
    %v132 = vld [vmem:[%s3 + $0xc] sm:$0xf]
    %v133 = vld [vmem:[%s3 + $0x10] sm:$0xf]
    %v134 = vld [vmem:[%s3 + $0x14] sm:$0xf]
    %v135 = vld [vmem:[%s3 + $0x18] sm:$0xf]
    %v136 = vld [vmem:[%s3 + $0x1c] sm:$0xf]
    %v137 = vld [vmem:[%s3 + $0x20] sm:$0xf]
    %v138 = vld [vmem:[%s3 + $0x24] sm:$0xf]
    %v139 = vld [vmem:[%s3 + $0x28] sm:$0xf]
    %v140 = vld [vmem:[%s3 + $0x2c] sm:$0xf]
    %v141 = vld [vmem:[%s3 + $0x30] sm:$0xf]
    %v142 = vld [vmem:[%s3 + $0x34] sm:$0xf]
    %v143 = vld [vmem:[%s3 + $0x38] sm:$0xf]
    %v144 = vld [vmem:[%s3 + $0x3c] sm:$0xf]
    %v145 = vld [vmem:[%s4] sm:$0x1]
    %v147 = vlaneseq
    %v148 = vshrl.u32 %v147, 7
    %v149 = vsub.s32 0, %v148
    %v150 = vrot.slane %v145, %v149
    %v168 = vunpack.c.l.b16 %v129
    %v169 = vunpack.c.l.b16 %v130
    %v170 = vunpack.c.l.b16 %v131
    %v171 = vunpack.c.l.b16 %v132
    %v172 = vunpack.c.l.b16 %v133
    %v173 = vunpack.c.l.b16 %v134
    %v174 = vunpack.c.l.b16 %v135
    %v175 = vunpack.c.l.b16 %v136
    %v176 = vunpack.c.l.b16 %v137
    %v177 = vunpack.c.l.b16 %v138
    %v178 = vunpack.c.l.b16 %v139
    %v179 = vunpack.c.l.b16 %v140
    %v180 = vunpack.c.l.b16 %v141
    %v181 = vunpack.c.l.b16 %v142
    %v182 = vunpack.c.l.b16 %v143
    %v183 = vunpack.c.l.b16 %v144
    %v184 = vpack.c.b16 %v169, %v168
    %v185 = vpack.c.b16 %v171, %v170
    %v186 = vpack.c.b16 %v173, %v172
    %v187 = vpack.c.b16 %v175, %v174
    %v188 = vpack.c.b16 %v177, %v176
    %v189 = vpack.c.b16 %v179, %v178
    %v190 = vpack.c.b16 %v181, %v180
    %v191 = vpack.c.b16 %v183, %v182
    %200 = vmatprep.subr.bf16.mxu0 0
    %201 = vmatpush1.bf16.msra.mxu0 %v191
    %202 = vmatprep.subr.bf16.mxu0 0
    %203 = vmatpush1.bf16.msra.mxu0 %v190
    %204 = vmatprep.subr.bf16.mxu0 0
    %205 = vmatpush1.bf16.msra.mxu0 %v189
    %206 = vmatprep.subr.bf16.mxu0 0
    %207 = vmatpush1.bf16.msra.mxu0 %v188
    %208 = vmatprep.subr.bf16.mxu0 0
    %209 = vmatpush1.bf16.msra.mxu0 %v187
    %210 = vmatprep.subr.bf16.mxu0 0
    %211 = vmatpush1.bf16.msra.mxu0 %v186
    %212 = vmatprep.subr.bf16.mxu0 0
    %213 = vmatpush1.bf16.msra.mxu0 %v185
    %214 = vmatprep.subr.bf16.mxu0 0
    %215 = vmatpush1.bf16.msra.mxu0 %v184
    %216 = vmatprep.subr.bf16.mxu0 0
    %217 = vmatpush2.bf16.msra.mxu0 0
    %218 = vmatprep.subr.bf16.mxu0 0
    %219 = vmatpush2.bf16.msra.mxu0 0
    %220 = vmatprep.subr.bf16.mxu0 0
    %221 = vmatpush2.bf16.msra.mxu0 0
    %222 = vmatprep.subr.bf16.mxu0 0
    %223 = vmatpush2.bf16.msra.mxu0 0
    %224 = vmatprep.subr.bf16.mxu0 0
    %225 = vmatpush2.bf16.msra.mxu0 0
    %226 = vmatprep.subr.bf16.mxu0 0
    %227 = vmatpush2.bf16.msra.mxu0 0
    %228 = vmatprep.subr.bf16.mxu0 0
    %229 = vmatpush2.bf16.msra.mxu0 0
    %230 = vmatprep.subr.bf16.mxu0 0
    %231 = vmatpush2.bf16.msra.mxu0 0
    %232 = vmatprep.mubr.bf16.mxu0 0
    %233 = vmatmul.mubr.bf16.gmra.mxu0 %v128
    %v234 = vpop.f32.mrf.mxu0
    %v235 = vadd.f32 %v150, %v234
    %v236 = vpop.f32.mrf.mxu0
    %v237 = vpop.f32.mrf.mxu0
    %v238 = vadd.f32 %v150, %v237
    %v239 = vpop.f32.mrf.mxu0
    %240 = vdwg.mxu0
    %v241 = vmax.f32 %v235, 0.0
    %v242 = vmax.f32 %v238, 0.0
    %v243 = vpack.c.bf16 %v242, %v241
    %v244 = vld [vmem:[%s5] sm:$0xf]
    %v245 = vld [vmem:[%s5 + $0x4] sm:$0xf]
    %v246 = vld [vmem:[%s5 + $0x8] sm:$0xf]
    %v247 = vld [vmem:[%s5 + $0xc] sm:$0xf]
    %v248 = vld [vmem:[%s5 + $0x10] sm:$0xf]
    %v249 = vld [vmem:[%s5 + $0x14] sm:$0xf]
    %v250 = vld [vmem:[%s5 + $0x18] sm:$0xf]
    %v251 = vld [vmem:[%s5 + $0x1c] sm:$0xf]
    %v252 = vld [vmem:[%s5 + $0x20] sm:$0xf]
    %v253 = vld [vmem:[%s5 + $0x24] sm:$0xf]
    %v254 = vld [vmem:[%s5 + $0x28] sm:$0xf]
    %v255 = vld [vmem:[%s5 + $0x2c] sm:$0xf]
    %v256 = vld [vmem:[%s5 + $0x30] sm:$0xf]
    %v257 = vld [vmem:[%s5 + $0x34] sm:$0xf]
    %v258 = vld [vmem:[%s5 + $0x38] sm:$0xf]
    %v259 = vld [vmem:[%s5 + $0x3c] sm:$0xf]
    %v260 = vld [vmem:[%s6] sm:$0x1]
    %v262 = vlaneseq
    %v263 = vshrl.u32 %v262, 7
    %v264 = vsub.s32 0, %v263
    %v265 = vrot.slane %v260, %v264
    %v283 = vunpack.c.l.b16 %v244
    %v284 = vunpack.c.l.b16 %v245
    %v285 = vunpack.c.l.b16 %v246
    %v286 = vunpack.c.l.b16 %v247
    %v287 = vunpack.c.l.b16 %v248
    %v288 = vunpack.c.l.b16 %v249
    %v289 = vunpack.c.l.b16 %v250
    %v290 = vunpack.c.l.b16 %v251
    %v291 = vunpack.c.l.b16 %v252
    %v292 = vunpack.c.l.b16 %v253
    %v293 = vunpack.c.l.b16 %v254
    %v294 = vunpack.c.l.b16 %v255
    %v295 = vunpack.c.l.b16 %v256
    %v296 = vunpack.c.l.b16 %v257
    %v297 = vunpack.c.l.b16 %v258
    %v298 = vunpack.c.l.b16 %v259
    %v299 = vpack.c.b16 %v284, %v283
    %v300 = vpack.c.b16 %v286, %v285
    %v301 = vpack.c.b16 %v288, %v287
    %v302 = vpack.c.b16 %v290, %v289
    %v303 = vpack.c.b16 %v292, %v291
    %v304 = vpack.c.b16 %v294, %v293
    %v305 = vpack.c.b16 %v296, %v295
    %v306 = vpack.c.b16 %v298, %v297
    %315 = vmatprep.subr.bf16.mxu0 0
    %316 = vmatpush1.bf16.msra.mxu0 %v306
    %317 = vmatprep.subr.bf16.mxu0 0
    %318 = vmatpush1.bf16.msra.mxu0 %v305
    %319 = vmatprep.subr.bf16.mxu0 0
    %320 = vmatpush1.bf16.msra.mxu0 %v304
    %321 = vmatprep.subr.bf16.mxu0 0
    %322 = vmatpush1.bf16.msra.mxu0 %v303
    %323 = vmatprep.subr.bf16.mxu0 0
    %324 = vmatpush1.bf16.msra.mxu0 %v302
    %325 = vmatprep.subr.bf16.mxu0 0
    %326 = vmatpush1.bf16.msra.mxu0 %v301
    %327 = vmatprep.subr.bf16.mxu0 0
    %328 = vmatpush1.bf16.msra.mxu0 %v300
    %329 = vmatprep.subr.bf16.mxu0 0
    %330 = vmatpush1.bf16.msra.mxu0 %v299
    %331 = vmatprep.subr.bf16.mxu0 0
    %332 = vmatpush2.bf16.msra.mxu0 0
    %333 = vmatprep.subr.bf16.mxu0 0
    %334 = vmatpush2.bf16.msra.mxu0 0
    %335 = vmatprep.subr.bf16.mxu0 0
    %336 = vmatpush2.bf16.msra.mxu0 0
    %337 = vmatprep.subr.bf16.mxu0 0
    %338 = vmatpush2.bf16.msra.mxu0 0
    %339 = vmatprep.subr.bf16.mxu0 0
    %340 = vmatpush2.bf16.msra.mxu0 0
    %341 = vmatprep.subr.bf16.mxu0 0
    %342 = vmatpush2.bf16.msra.mxu0 0
    %343 = vmatprep.subr.bf16.mxu0 0
    %344 = vmatpush2.bf16.msra.mxu0 0
    %345 = vmatprep.subr.bf16.mxu0 0
    %346 = vmatpush2.bf16.msra.mxu0 0
    %347 = vmatprep.mubr.bf16.mxu0 0
    %348 = vmatmul.mubr.bf16.gmra.mxu0 %v243
    %v349 = vpop.f32.mrf.mxu0
    %v350 = vadd.f32 %v265, %v349
    %v351 = vpop.f32.mrf.mxu0
    %v352 = vpop.f32.mrf.mxu0
    %v353 = vadd.f32 %v265, %v352
    %v354 = vpop.f32.mrf.mxu0
    %355 = vdwg.mxu0
    %v356 = vtanh.pop %v350
    %v357 = vtanh.pop %v353
    %vm358 = vcmask 48128
    %359 = vst.msk [vmem:[%s7] sm:$0xff] %vm358, %v356
    %360 = vst.msk [vmem:[%s7 + $0x8] sm:$0xff] %vm358, %v357
    // Predicated region
    $region38: #{tpu_custom_call.1} parent=1 // pred_check
      _
    $region39: #{tpu_custom_call.1} parent=1 // pred_check_branch
      %362 = sbr.rel (0) target = $region41
    $region40: #{tpu_custom_call.1} parent=1 // pred_region
      _
    $region41: #{tpu_custom_call.1} parent=1 // pred_fallthru
      _
    // Predicated region
    $region42: #{tpu_custom_call.1} parent=1 // pred_check
      _
    $region43: #{tpu_custom_call.1} parent=1 // pred_check_branch
      %364 = sbr.rel (0) target = $region45
    $region44: #{tpu_custom_call.1} parent=1 // pred_region
      _
    $region45: #{tpu_custom_call.1} parent=1 // pred_fallthru
      _
    %365 = vsyncpa [#allocation3], 1
    %366 = vsyncpa [#allocation5], 1

</llo_original>
